<compile_context>
chip_gen: v6e
topology: v6e:2x2x1
jax: 0.10.0
libtpu: 0.0.40
codegen_flags: <defaults>
</compile_context>

<pallas_src>
import jax
import jax.numpy as jnp
from jax.experimental import pallas as pl
from jax.experimental.pallas import tpu as pltpu

LN_EPS = 1e-5


def _round_up(n: int, m: int) -> int:
    return ((n + m - 1) // m) * m


def _layernorm(h, gamma, beta, *, relu=False):
    """h: (tb, D) f32; gamma/beta: (1, D) f32. Classic two-pass LayerNorm."""
    mu = jnp.mean(h, axis=-1, keepdims=True)          # (tb, 1)
    hc = h - mu                                        # reused for var and output
    var = jnp.mean(hc * hc, axis=-1, keepdims=True)    # (tb, 1), non-negative
    inv = jax.lax.rsqrt(var + LN_EPS)                  # EUP
    out = hc * inv * gamma + beta
    if relu:
        out = jnp.maximum(out, 0.0)
    return out


def residual_linear_kernel(
    x_ref,      # (tb, D)        input rows (any float dtype)
    w1_ref,     # (D, D)   bf16  pre-transposed (in, out)
    w2_ref,     # (D, D)   bf16  pre-transposed (in, out)
    vecs_ref,   # (8, D)   f32   rows: b1, g1, be1, b2, g2, be2, pad, pad
    o_ref,      # (tb, D)
):
    x_mxu = x_ref[...].astype(jnp.bfloat16)            # MXU operand

    b1 = vecs_ref[0:1, :]
    g1 = vecs_ref[1:2, :]
    be1 = vecs_ref[2:3, :]
    b2 = vecs_ref[3:4, :]
    g2 = vecs_ref[4:5, :]
    be2 = vecs_ref[5:6, :]

    # Linear 1 (bf16 x bf16 -> f32 acc) + LayerNorm + ReLU (all LN math in f32).
    h = jnp.dot(x_mxu, w1_ref[...], preferred_element_type=jnp.float32) + b1
    h = _layernorm(h, g1, be1, relu=True)

    # Linear 2 + LayerNorm.
    h = jnp.dot(h.astype(jnp.bfloat16), w2_ref[...],
                preferred_element_type=jnp.float32) + b2
    h = _layernorm(h, g2, be2)

    # Residual: re-read x from its resident VMEM tile here (cheap vld) instead
    # of keeping a full f32 copy live across the matmuls/LNs.
    o_ref[...] = (x_ref[...].astype(jnp.float32) + h).astype(o_ref.dtype)


def _physical_vmem_bytes() -> int:
    try:
        return int(pltpu.get_tpu_info().vmem_capacity_bytes)
    except Exception:
        return 64 << 20            # conservative fallback (v7x per-TC VMEM)


def _vmem_estimate(tb: int, D: int, x_itemsize: int,
                   w_itemsize: int = 2, x_buffers: int = 2) -> int:
    return (x_buffers * tb * D * x_itemsize     # x tiles (pipeline buffers)
            + 2 * tb * D * x_itemsize           # out tiles (2 buffers)
            + 2 * D * D * w_itemsize            # w1 + w2, Buffered(1)
            + 8 * D * 4                         # packed bias/gamma/beta
            + 4 * tb * D * 4)                   # f32 intermediates headroom


def _choose_tb(B: int, D: int, x_itemsize: int, vmem_budget: int) -> int:
    if B <= 128:
        return B                                 # whole problem in one grid step
    if B <= 512:
        # >= 2 grid steps so the "parallel" batch axis can be sharded across
        # v7x's two TensorCores; raggedness is handled by padding in the wrapper.
        return _round_up((B + 1) // 2, 8)
    # Large batch: biggest tile whose footprint fits the VMEM budget
    # (bigger tiles amortize ~0.35 us/step overhead and hit the HBM roofline).
    for tb in (512, 256, 128, 64, 32):
        if _vmem_estimate(tb, D, x_itemsize) <= vmem_budget:
            return tb
    return 32


def _compiler_params(est: int, vmem_cap: int):
    kwargs = dict(dimension_semantics=("parallel",))
    if est > (16 << 20):                         # above v5e's default scoped limit
        # Never request more than physical VMEM minus Mosaic-internal headroom.
        kwargs["vmem_limit_bytes"] = min(int(est * 1.25), vmem_cap - (8 << 20))
    return pltpu.CompilerParams(**kwargs)


def residual_linear_layer(x, params, *, tb=None):
    """x: (B, D). params: w1,b1,g1,be1,w2,b2,g2,be2 (weights bf16, (in,out))."""
    B, D_in = x.shape
    D_out = params["w1"].shape[1]
    assert D_in == D_out, "residual add requires dim_in == dim_out"

    x_itemsize = jnp.dtype(x.dtype).itemsize
    w_itemsize = jnp.dtype(params["w1"].dtype).itemsize
    vmem_cap = _physical_vmem_bytes()
    vmem_budget = vmem_cap - (8 << 20)

    if tb is None:
        tb = _choose_tb(B, D_out, x_itemsize, vmem_budget)

    # Ragged batches: pad up to a multiple of the tile, slice the output.
    B_pad = _round_up(B, tb)
    grid_steps = B_pad // tb
    x_in = x if B_pad == B else jnp.pad(x, ((0, B_pad - B), (0, 0)))

    # Small-D (memory-bound) regime: a 3rd x buffer hides exposed DMA using the
    # VMEM freed by Buffered(1) weights.
    x_buffers = 3 if (grid_steps > 2 and D_out <= 512) else 2

    est = _vmem_estimate(tb, D_out, x_itemsize, w_itemsize, x_buffers)
    assert est <= vmem_budget, (
        f"estimated VMEM footprint {est >> 20} MiB exceeds budget "
        f"{vmem_budget >> 20} MiB — weights no longer fit resident")
    # TODO(synk): for D beyond whole-weight VMEM residency (bf16 D >~ 3.3k on
    # v7x with Buffered(1), ~5k on v5e/v6e) keep w1/w2 in HBM (pl.ANY) and
    # stream K-tiles with pltpu.emit_pipeline into a (tb, D) f32 accumulator.

    # Pack the six (1, D) vectors into one (8, D) f32 array (2 zero pad rows).
    vecs = jnp.concatenate(
        [params["b1"].astype(jnp.float32), params["g1"].astype(jnp.float32),
         params["be1"].astype(jnp.float32), params["b2"].astype(jnp.float32),
         params["g2"].astype(jnp.float32), params["be2"].astype(jnp.float32),
         jnp.zeros((2, D_out), jnp.float32)], axis=0)

    row_spec = pl.BlockSpec((tb, D_in), lambda i: (i, 0),
                            pipeline_mode=pl.Buffered(x_buffers))
    # Constant block index across the grid: Pallas elides re-DMA, and a single
    # pipeline buffer avoids paying 2x VMEM for data that never changes.
    const_spec = lambda shape: pl.BlockSpec(shape, lambda i: (0, 0),
                                            pipeline_mode=pl.Buffered(1))

    cost = pl.CostEstimate(
        flops=4 * B_pad * D_out * D_out,                       # two (tb,D)x(D,D) matmuls
        transcendentals=2 * B_pad,                             # two rsqrt per row
        bytes_accessed=(2 * B_pad * D_out * x_itemsize         # x read + out write
                        + 2 * D_out * D_out * w_itemsize       # w1 + w2
                        + 8 * D_out * 4))                      # packed vectors

    out = pl.pallas_call(
        residual_linear_kernel,
        out_shape=jax.ShapeDtypeStruct((B_pad, D_out), x.dtype),
        grid_spec=pltpu.PrefetchScalarGridSpec(
            num_scalar_prefetch=0,
            grid=(grid_steps,),
            in_specs=[
                row_spec,                        # x
                const_spec((D_in, D_out)),       # w1 (bf16)
                const_spec((D_out, D_out)),      # w2 (bf16)
                const_spec((8, D_out)),          # packed b1,g1,be1,b2,g2,be2
            ],
            out_specs=pl.BlockSpec((tb, D_out), lambda i: (i, 0)),
        ),
        compiler_params=_compiler_params(est, vmem_cap),
        cost_estimate=cost,
    )(x_in, params["w1"], params["w2"], vecs)

    return out if B_pad == B else out[:B]


def init_params(key, dim_in, dim_out, weight_dtype=jnp.bfloat16):
    """Deterministic init mimicking PyTorch defaults (uniform(-1/sqrt(fan_in)));
    weights stored transposed (in, out) and cast to bf16 for the MXU."""
    k1, k2, k3, k4 = jax.random.split(key, 4)
    bound1 = 1.0 / (dim_in ** 0.5)
    bound2 = 1.0 / (dim_out ** 0.5)
    return {
        "w1": jax.random.uniform(k1, (dim_in, dim_out), jnp.float32,
                                 -bound1, bound1).astype(weight_dtype),
        "b1": jax.random.uniform(k2, (1, dim_out), jnp.float32, -bound1, bound1),
        "g1": jnp.ones((1, dim_out), jnp.float32),
        "be1": jnp.zeros((1, dim_out), jnp.float32),
        "w2": jax.random.uniform(k3, (dim_out, dim_out), jnp.float32,
                                 -bound2, bound2).astype(weight_dtype),
        "b2": jax.random.uniform(k4, (1, dim_out), jnp.float32, -bound2, bound2),
        "g2": jnp.ones((1, dim_out), jnp.float32),
        "be2": jnp.zeros((1, dim_out), jnp.float32),
    }


def reference(x, p):
    """Pure-JAX f32 reference of the PyTorch forward (bf16-stored weights
    upcast to f32; the kernel additionally feeds bf16 activations to the MXU)."""
    def ln(h, g, b):
        mu = jnp.mean(h, axis=-1, keepdims=True)
        var = jnp.mean((h - mu) ** 2, axis=-1, keepdims=True)
        return (h - mu) / jnp.sqrt(var + LN_EPS) * g + b
    w1 = p["w1"].astype(jnp.float32)
    w2 = p["w2"].astype(jnp.float32)
    h = x @ w1 + p["b1"]
    h = jnp.maximum(ln(h, p["g1"], p["be1"]), 0.0)
    h = h @ w2 + p["b2"]
    h = ln(h, p["g2"], p["be2"])
    return x + h


def _check(B, D, kx, kp, tb=None):
    x = jax.random.normal(kx, (B, D), dtype=jnp.float32)
    params = init_params(kp, D, D)
    out = jax.block_until_ready(residual_linear_layer(x, params, tb=tb))
    ref = reference(x, params)
    assert out.shape == (B, D) and out.dtype == x.dtype
    # bf16 MXU operands (f32 accumulation, f32 LayerNorm) -> loosened tolerance.
    assert jnp.allclose(out, ref, atol=2e-2, rtol=2e-2), \
        f"mismatch vs reference for B={B}, D={D}"


if __name__ == "__main__":
    key = jax.random.PRNGKey(0)
    kx, kp, kx2, kp2, kx3, kp3 = jax.random.split(key, 6)

    # Small toy shape: whole batch in one grid step (tb=B=16, grid=(1,)).
    _check(16, 128, kx, kp)

    # Ragged mid-size batch: tb=104, padded to 208, grid=(2,), output sliced.
    _check(200, 128, kx2, kp2)

    # Larger batch: split into 2 parallel grid steps (tb=192) for v7x's 2 TCs.
    _check(384, 256, kx3, kp3)

    print("KERNEL_OK")
</pallas_src>

<mosaic_0001>
module attributes {stable_mosaic.version = 11 : i64} {
  func.func @residual_linear_kernel(%arg0: i32, %arg1: memref<16x128xf32, #tpu.memory_space<vmem>>, %arg2: memref<128x128xbf16, #tpu.memory_space<vmem>>, %arg3: memref<128x128xbf16, #tpu.memory_space<vmem>>, %arg4: memref<8x128xf32, #tpu.memory_space<vmem>>, %arg5: memref<16x128xf32, #tpu.memory_space<vmem>>) attributes {dimension_semantics = [#tpu.dimension_semantics<parallel>], iteration_bounds = array<i64: 1>, scalar_prefetch = 0 : i64, scratch_operands = 0 : i64, tpu.core_type = #tpu.core_type<tc>, window_params = [{pipeline_mode = #tpu.pipeline_mode<double_buffered>, transform_indices = @transform_0, window_bounds = array<i64: 16, 128>}, {pipeline_mode = #tpu.pipeline_mode<synchronous>, transform_indices = @transform_1, window_bounds = array<i64: 128, 128>}, {pipeline_mode = #tpu.pipeline_mode<synchronous>, transform_indices = @transform_2, window_bounds = array<i64: 128, 128>}, {pipeline_mode = #tpu.pipeline_mode<synchronous>, transform_indices = @transform_3, window_bounds = array<i64: 8, 128>}, {transform_indices = @transform_4, window_bounds = array<i64: 16, 128>}]} {
    %c0 = arith.constant 0 : index
    %c0_0 = arith.constant 0 : index
    %0 = vector.load %arg1[%c0, %c0_0] : memref<16x128xf32, #tpu.memory_space<vmem>>, vector<16x128xf32>
    %1 = arith.truncf %0 : vector<16x128xf32> to vector<16x128xbf16>
    %c0_1 = arith.constant 0 : index
    %c0_2 = arith.constant 0 : index
    %2 = vector.load %arg4[%c0_1, %c0_2] : memref<8x128xf32, #tpu.memory_space<vmem>>, vector<1x128xf32>
    %c1 = arith.constant 1 : index
    %c0_3 = arith.constant 0 : index
    %3 = vector.load %arg4[%c1, %c0_3] : memref<8x128xf32, #tpu.memory_space<vmem>>, vector<1x128xf32>
    %c2 = arith.constant 2 : index
    %c0_4 = arith.constant 0 : index
    %4 = vector.load %arg4[%c2, %c0_4] : memref<8x128xf32, #tpu.memory_space<vmem>>, vector<1x128xf32>
    %c3 = arith.constant 3 : index
    %c0_5 = arith.constant 0 : index
    %5 = vector.load %arg4[%c3, %c0_5] : memref<8x128xf32, #tpu.memory_space<vmem>>, vector<1x128xf32>
    %c4 = arith.constant 4 : index
    %c0_6 = arith.constant 0 : index
    %6 = vector.load %arg4[%c4, %c0_6] : memref<8x128xf32, #tpu.memory_space<vmem>>, vector<1x128xf32>
    %c5 = arith.constant 5 : index
    %c0_7 = arith.constant 0 : index
    %7 = vector.load %arg4[%c5, %c0_7] : memref<8x128xf32, #tpu.memory_space<vmem>>, vector<1x128xf32>
    %c0_8 = arith.constant 0 : index
    %c0_9 = arith.constant 0 : index
    %8 = vector.load %arg2[%c0_8, %c0_9] : memref<128x128xbf16, #tpu.memory_space<vmem>>, vector<128x128xbf16>
    %cst = arith.constant dense<0.000000e+00> : vector<16x128xf32>
    %9 = tpu.matmul %1, %8, %cst {dimension_numbers = #tpu.dot_dimension_numbers<[1], [0], [0], [1], [0, 0, 1, 1], [], []>} : vector<16x128xbf16>, vector<128x128xbf16>, vector<16x128xf32> -> vector<16x128xf32>
    %10 = vector.broadcast %2 : vector<1x128xf32> to vector<16x128xf32>
    %11 = arith.addf %9, %10 : vector<16x128xf32>
    %cst_10 = arith.constant dense<0.000000e+00> : vector<16xf32>
    %12 = vector.multi_reduction <add>, %11, %cst_10 [1] : vector<16x128xf32> to vector<16xf32>
    %13 = vector.shape_cast %12 : vector<16xf32> to vector<16x1xf32>
    %cst_11 = arith.constant 1.280000e+02 : f32
    %14 = vector.broadcast %cst_11 : f32 to vector<16x1xf32>
    %15 = arith.divf %13, %14 : vector<16x1xf32>
    %16 = vector.broadcast %15 : vector<16x1xf32> to vector<16x128xf32>
    %17 = arith.subf %11, %16 : vector<16x128xf32>
    %18 = arith.mulf %17, %17 : vector<16x128xf32>
    %cst_12 = arith.constant dense<0.000000e+00> : vector<16xf32>
    %19 = vector.multi_reduction <add>, %18, %cst_12 [1] : vector<16x128xf32> to vector<16xf32>
    %20 = vector.shape_cast %19 : vector<16xf32> to vector<16x1xf32>
    %cst_13 = arith.constant 1.280000e+02 : f32
    %21 = vector.broadcast %cst_13 : f32 to vector<16x1xf32>
    %22 = arith.divf %20, %21 : vector<16x1xf32>
    %cst_14 = arith.constant 9.99999974E-6 : f32
    %23 = vector.broadcast %cst_14 : f32 to vector<16x1xf32>
    %24 = arith.addf %22, %23 : vector<16x1xf32>
    %25 = math.rsqrt %24 : vector<16x1xf32>
    %26 = vector.broadcast %25 : vector<16x1xf32> to vector<16x128xf32>
    %27 = arith.mulf %17, %26 : vector<16x128xf32>
    %28 = vector.broadcast %3 : vector<1x128xf32> to vector<16x128xf32>
    %29 = arith.mulf %27, %28 : vector<16x128xf32>
    %30 = vector.broadcast %4 : vector<1x128xf32> to vector<16x128xf32>
    %31 = arith.addf %29, %30 : vector<16x128xf32>
    %cst_15 = arith.constant 0.000000e+00 : f32
    %32 = vector.broadcast %cst_15 : f32 to vector<16x128xf32>
    %33 = arith.maximumf %31, %32 : vector<16x128xf32>
    %34 = arith.truncf %33 : vector<16x128xf32> to vector<16x128xbf16>
    %c0_16 = arith.constant 0 : index
    %c0_17 = arith.constant 0 : index
    %35 = vector.load %arg3[%c0_16, %c0_17] : memref<128x128xbf16, #tpu.memory_space<vmem>>, vector<128x128xbf16>
    %cst_18 = arith.constant dense<0.000000e+00> : vector<16x128xf32>
    %36 = tpu.matmul %34, %35, %cst_18 {dimension_numbers = #tpu.dot_dimension_numbers<[1], [0], [0], [1], [0, 0, 1, 1], [], []>} : vector<16x128xbf16>, vector<128x128xbf16>, vector<16x128xf32> -> vector<16x128xf32>
    %37 = vector.broadcast %5 : vector<1x128xf32> to vector<16x128xf32>
    %38 = arith.addf %36, %37 : vector<16x128xf32>
    %cst_19 = arith.constant dense<0.000000e+00> : vector<16xf32>
    %39 = vector.multi_reduction <add>, %38, %cst_19 [1] : vector<16x128xf32> to vector<16xf32>
    %40 = vector.shape_cast %39 : vector<16xf32> to vector<16x1xf32>
    %cst_20 = arith.constant 1.280000e+02 : f32
    %41 = vector.broadcast %cst_20 : f32 to vector<16x1xf32>
    %42 = arith.divf %40, %41 : vector<16x1xf32>
    %43 = vector.broadcast %42 : vector<16x1xf32> to vector<16x128xf32>
    %44 = arith.subf %38, %43 : vector<16x128xf32>
    %45 = arith.mulf %44, %44 : vector<16x128xf32>
    %cst_21 = arith.constant dense<0.000000e+00> : vector<16xf32>
    %46 = vector.multi_reduction <add>, %45, %cst_21 [1] : vector<16x128xf32> to vector<16xf32>
    %47 = vector.shape_cast %46 : vector<16xf32> to vector<16x1xf32>
    %cst_22 = arith.constant 1.280000e+02 : f32
    %48 = vector.broadcast %cst_22 : f32 to vector<16x1xf32>
    %49 = arith.divf %47, %48 : vector<16x1xf32>
    %cst_23 = arith.constant 9.99999974E-6 : f32
    %50 = vector.broadcast %cst_23 : f32 to vector<16x1xf32>
    %51 = arith.addf %49, %50 : vector<16x1xf32>
    %52 = math.rsqrt %51 : vector<16x1xf32>
    %53 = vector.broadcast %52 : vector<16x1xf32> to vector<16x128xf32>
    %54 = arith.mulf %44, %53 : vector<16x128xf32>
    %55 = vector.broadcast %6 : vector<1x128xf32> to vector<16x128xf32>
    %56 = arith.mulf %54, %55 : vector<16x128xf32>
    %57 = vector.broadcast %7 : vector<1x128xf32> to vector<16x128xf32>
    %58 = arith.addf %56, %57 : vector<16x128xf32>
    %c0_24 = arith.constant 0 : index
    %c0_25 = arith.constant 0 : index
    %59 = vector.load %arg1[%c0_24, %c0_25] : memref<16x128xf32, #tpu.memory_space<vmem>>, vector<16x128xf32>
    %60 = arith.addf %59, %58 : vector<16x128xf32>
    %c0_26 = arith.constant 0 : index
    %c0_27 = arith.constant 0 : index
    %61 = vector.load %arg5[%c0_26, %c0_27] : memref<16x128xf32, #tpu.memory_space<vmem>>, vector<16x128xf32>
    tpu.vector_store %arg5[%c0_26, %c0_27], %60 {strides = array<i32>} : memref<16x128xf32, #tpu.memory_space<vmem>>, vector<16x128xf32>,
    return
  }
  func.func @transform_0(%arg0: i32) -> (i32, i32) {
    %c0_i32 = arith.constant 0 : i32
    %c0_i32_0 = arith.constant 0 : i32
    return %arg0, %c0_i32 : i32, i32
  }
  func.func @transform_1(%arg0: i32) -> (i32, i32) {
    %c0_i32 = arith.constant 0 : i32
    %c0_i32_0 = arith.constant 0 : i32
    %c0_i32_1 = arith.constant 0 : i32
    return %c0_i32, %c0_i32_0 : i32, i32
  }
  func.func @transform_2(%arg0: i32) -> (i32, i32) {
    %c0_i32 = arith.constant 0 : i32
    %c0_i32_0 = arith.constant 0 : i32
    %c0_i32_1 = arith.constant 0 : i32
    return %c0_i32, %c0_i32_0 : i32, i32
  }
  func.func @transform_3(%arg0: i32) -> (i32, i32) {
    %c0_i32 = arith.constant 0 : i32
    %c0_i32_0 = arith.constant 0 : i32
    %c0_i32_1 = arith.constant 0 : i32
    return %c0_i32, %c0_i32_0 : i32, i32
  }
  func.func @transform_4(%arg0: i32) -> (i32, i32) {
    %c0_i32 = arith.constant 0 : i32
    %c0_i32_0 = arith.constant 0 : i32
    return %arg0, %c0_i32 : i32, i32
  }
}

</mosaic_0001>

<llo_original>
// kernel: tpu_custom_call.1
$region0: #{tpu_custom_call.1}
  #allocation0 [shape = 'u32[]', space=smem, size = 0x4, offset = 0x4, fixed_abs, tag = 'smem constant byte address 0x4 - core index']
  #allocation1 [shape = 'u32[144,128]{1,0:T(1,128)}', space=vmem, size = 0x12000, scoped, tag = 'internal scratch']
  %s0 = inlined_call_operand.hbm [shape: f32[16,128], index: 0, kind: input, shape index: {}]
  %s1 = inlined_call_operand.hbm [shape: bf16[128,128], index: 1, kind: input, shape index: {}]
  %s2 = inlined_call_operand.hbm [shape: bf16[128,128], index: 2, kind: input, shape index: {}]
  %s3 = inlined_call_operand.hbm [shape: f32[8,128], index: 3, kind: input, shape index: {}]
  %s4 = inlined_call_operand.hbm [shape: f32[16,128], index: 4, kind: output, shape index: {}]
  %s5 = sld [smem:[#allocation0]]
  $region42: #{tpu_custom_call.1} parent=0
    _
  %s7 = ssub.s32 1, %s5
  %s8 = scalar_select 0, %s7, %s5
  $region1: #{tpu_custom_call.1} parent=0
    #allocation2 [shape = 'u8[8192]{0}', space=vmem, size = 0x2000, scoped, tag = 'input window, operand 0, single buffered']
    #allocation3 [shape = 's32[1]{0}', space=sflag, size = 0x4, scoped, tag = 'scoped memory for tpu_custom_call.1']
    #allocation4 [shape = 's32[1]{0}', space=sflag, size = 0x4, scoped, tag = 'scoped memory for tpu_custom_call.1']
    #allocation5 [shape = 'u8[32768]{0}', space=vmem, size = 0x8000, scoped, tag = 'input window, operand 1, single buffered']
    #allocation6 [shape = 's32[1]{0}', space=sflag, size = 0x4, scoped, tag = 'scoped memory for tpu_custom_call.1']
    #allocation7 [shape = 'u8[32768]{0}', space=vmem, size = 0x8000, scoped, tag = 'input window, operand 2, single buffered']
    #allocation8 [shape = 'u8[4096]{0}', space=vmem, size = 0x1000, scoped, tag = 'input window, operand 3, single buffered']
    #allocation9 [shape = 's32[1]{0}', space=sflag, size = 0x4, scoped, tag = 'scoped memory for tpu_custom_call.1']
    #allocation10 [shape = 'u8[8192]{0}', space=vmem, size = 0x2000, scoped, tag = 'output window, operand 0, single buffered']
    %9 = vsyncpa [#allocation3], 0
    %10 = vsyncpa [#allocation6], 0
    %11 = vsyncpa [#allocation9], 0
    %12 = vsyncpa [#allocation4], 0
    // Predicated region
    $region2: #{tpu_custom_call.1} parent=1 // pred_check
      _
    $region3: #{tpu_custom_call.1} parent=1 // pred_check_branch
      %14 = sbr.rel (0) target = $region5
    $region4: #{tpu_custom_call.1} parent=1 // pred_region
      %s16 = ssub.s32 256, 256
      %17 = vsyncadd [#allocation3], %s16
      %s18 = sshll.u32 [#allocation2], 4
      %s19 = int_to_ptr.vmem [resolvable:$true] %s18
      %24 = dma.hbm_to_vmem [thread:$0]  %s0, 256, %s19, [#allocation3], 128, 128, 8
    $region5: #{tpu_custom_call.1} parent=1 // pred_fallthru
      _
    // Predicated region
    $region6: #{tpu_custom_call.1} parent=1 // pred_check
      _
    $region7: #{tpu_custom_call.1} parent=1 // pred_check_branch
      %26 = sbr.rel (0) target = $region9
    $region8: #{tpu_custom_call.1} parent=1 // pred_region
      %s28 = ssub.s32 1024, 1024
      %29 = vsyncadd [#allocation6], %s28
      %s30 = sshll.u32 [#allocation5], 4
      %s31 = int_to_ptr.vmem [resolvable:$true] %s30
      %36 = dma.hbm_to_vmem [thread:$0]  %s1, 1024, %s31, [#allocation6], 64, 64, 4
    $region9: #{tpu_custom_call.1} parent=1 // pred_fallthru
      _
    // Predicated region
    $region10: #{tpu_custom_call.1} parent=1 // pred_check
      _
    $region11: #{tpu_custom_call.1} parent=1 // pred_check_branch
      %38 = sbr.rel (0) target = $region13
    $region12: #{tpu_custom_call.1} parent=1 // pred_region
      %s40 = ssub.s32 1024, 1024
      %41 = vsyncadd [#allocation6], %s40
      %s42 = sshll.u32 [#allocation7], 4
      %s43 = int_to_ptr.vmem [resolvable:$true] %s42
      %48 = dma.hbm_to_vmem [thread:$0]  %s2, 1024, %s43, [#allocation6], 64, 64, 4
    $region13: #{tpu_custom_call.1} parent=1 // pred_fallthru
      _
    // Predicated region
    $region14: #{tpu_custom_call.1} parent=1 // pred_check
      _
    $region15: #{tpu_custom_call.1} parent=1 // pred_check_branch
      %50 = sbr.rel (0) target = $region17
    $region16: #{tpu_custom_call.1} parent=1 // pred_region
      %s52 = ssub.s32 128, 128
      %53 = vsyncadd [#allocation9], %s52
      %s55 = sshll.u32 [#allocation8], 4
      %s56 = int_to_ptr.vmem [resolvable:$true] %s55
      %58 = dma.hbm_to_vmem [thread:$0]  %s3, 128, %s56, [#allocation9]
    $region17: #{tpu_custom_call.1} parent=1 // pred_fallthru
      _
    // Predicated region
    $region18: #{tpu_custom_call.1} parent=1 // pred_check
      _
    $region19: #{tpu_custom_call.1} parent=1 // pred_check_branch
      %60 = sbr.rel (0) target = $region21
    $region20: #{tpu_custom_call.1} parent=1 // pred_region
      %61 = dma.done [#allocation3], 256
    $region21: #{tpu_custom_call.1} parent=1 // pred_fallthru
      _
    // Predicated region
    $region22: #{tpu_custom_call.1} parent=1 // pred_check
      _
    $region23: #{tpu_custom_call.1} parent=1 // pred_check_branch
      %63 = sbr.rel (0) target = $region25
    $region24: #{tpu_custom_call.1} parent=1 // pred_region
      %64 = dma.done [#allocation6], 1024
    $region25: #{tpu_custom_call.1} parent=1 // pred_fallthru
      _
    // Predicated region
    $region26: #{tpu_custom_call.1} parent=1 // pred_check
      _
    $region27: #{tpu_custom_call.1} parent=1 // pred_check_branch
      %66 = sbr.rel (0) target = $region29
    $region28: #{tpu_custom_call.1} parent=1 // pred_region
      %67 = dma.done [#allocation6], 1024
    $region29: #{tpu_custom_call.1} parent=1 // pred_fallthru
      _
    // Predicated region
    $region30: #{tpu_custom_call.1} parent=1 // pred_check
      _
    $region31: #{tpu_custom_call.1} parent=1 // pred_check_branch
      %69 = sbr.rel (0) target = $region33
    $region32: #{tpu_custom_call.1} parent=1 // pred_region
      %70 = dma.done [#allocation9], 128
    $region33: #{tpu_custom_call.1} parent=1 // pred_fallthru
      _
    %v72 = vld [vmem:[#allocation2] sm:$0xff]
    %v73 = vld [vmem:[#allocation2 + $0x8] sm:$0xff]
    %v74 = vpack.c.bf16 %v73, %v72
    %v75 = vld [vmem:[#allocation8] sm:$0x1]
    %v76 = vld [vmem:[#allocation8 + $0x1] sm:$0x1]
    %v77 = vld [vmem:[#allocation8 + $0x2] sm:$0x1]
    %v78 = vld [vmem:[#allocation8 + $0x3] sm:$0x1]
    %v79 = vld [vmem:[#allocation8 + $0x4] sm:$0x1]
    %v80 = vld [vmem:[#allocation8 + $0x5] sm:$0x1]
    %v81 = vld [vmem:[#allocation5] sm:$0xf]
    %v82 = vld [vmem:[#allocation5 + $0x4] sm:$0xf]
    %v83 = vld [vmem:[#allocation5 + $0x8] sm:$0xf]
    %v84 = vld [vmem:[#allocation5 + $0xc] sm:$0xf]
    %v85 = vld [vmem:[#allocation5 + $0x10] sm:$0xf]
    %v86 = vld [vmem:[#allocation5 + $0x14] sm:$0xf]
    %v87 = vld [vmem:[#allocation5 + $0x18] sm:$0xf]
    %v88 = vld [vmem:[#allocation5 + $0x1c] sm:$0xf]
    %v89 = vld [vmem:[#allocation5 + $0x20] sm:$0xf]
    %v90 = vld [vmem:[#allocation5 + $0x24] sm:$0xf]
    %v91 = vld [vmem:[#allocation5 + $0x28] sm:$0xf]
    %v92 = vld [vmem:[#allocation5 + $0x2c] sm:$0xf]
    %v93 = vld [vmem:[#allocation5 + $0x30] sm:$0xf]
    %v94 = vld [vmem:[#allocation5 + $0x34] sm:$0xf]
    %v95 = vld [vmem:[#allocation5 + $0x38] sm:$0xf]
    %v96 = vld [vmem:[#allocation5 + $0x3c] sm:$0xf]
    %v97 = vlaneseq
    %v98 = vshrl.u32 %v97, 7
    %v99 = vsub.s32 0, %v98
    %v100 = vrot.slane %v75, %v99
    %v117 = vunpack.c.l.b16 %v81
    %v118 = vunpack.c.l.b16 %v82
    %v119 = vunpack.c.l.b16 %v83
    %v120 = vunpack.c.l.b16 %v84
    %v121 = vunpack.c.l.b16 %v85
    %v122 = vunpack.c.l.b16 %v86
    %v123 = vunpack.c.l.b16 %v87
    %v124 = vunpack.c.l.b16 %v88
    %v125 = vunpack.c.l.b16 %v89
    %v126 = vunpack.c.l.b16 %v90
    %v127 = vunpack.c.l.b16 %v91
    %v128 = vunpack.c.l.b16 %v92
    %v129 = vunpack.c.l.b16 %v93
    %v130 = vunpack.c.l.b16 %v94
    %v131 = vunpack.c.l.b16 %v95
    %v132 = vunpack.c.l.b16 %v96
    %v133 = vpack.c.b16 %v118, %v117
    %v134 = vpack.c.b16 %v120, %v119
    %v135 = vpack.c.b16 %v122, %v121
    %v136 = vpack.c.b16 %v124, %v123
    %v137 = vpack.c.b16 %v126, %v125
    %v138 = vpack.c.b16 %v128, %v127
    %v139 = vpack.c.b16 %v130, %v129
    %v140 = vpack.c.b16 %v132, %v131
    %149 = vmatprep.subr.bf16.mxu0 0
    %150 = vmatpush1.bf16.msra.mxu0 %v140
    %151 = vmatprep.subr.bf16.mxu0 0
    %152 = vmatpush1.bf16.msra.mxu0 %v139
    %153 = vmatprep.subr.bf16.mxu0 0
    %154 = vmatpush1.bf16.msra.mxu0 %v138
    %155 = vmatprep.subr.bf16.mxu0 0
    %156 = vmatpush1.bf16.msra.mxu0 %v137
    %157 = vmatprep.subr.bf16.mxu0 0
    %158 = vmatpush1.bf16.msra.mxu0 %v136
    %159 = vmatprep.subr.bf16.mxu0 0
    %160 = vmatpush1.bf16.msra.mxu0 %v135
    %161 = vmatprep.subr.bf16.mxu0 0
    %162 = vmatpush1.bf16.msra.mxu0 %v134
    %163 = vmatprep.subr.bf16.mxu0 0
    %164 = vmatpush1.bf16.msra.mxu0 %v133
    %165 = vmatprep.subr.bf16.mxu0 0
    %166 = vmatpush2.bf16.msra.mxu0 0
    %167 = vmatprep.subr.bf16.mxu0 0
    %168 = vmatpush2.bf16.msra.mxu0 0
    %169 = vmatprep.subr.bf16.mxu0 0
    %170 = vmatpush2.bf16.msra.mxu0 0
    %171 = vmatprep.subr.bf16.mxu0 0
    %172 = vmatpush2.bf16.msra.mxu0 0
    %173 = vmatprep.subr.bf16.mxu0 0
    %174 = vmatpush2.bf16.msra.mxu0 0
    %175 = vmatprep.subr.bf16.mxu0 0
    %176 = vmatpush2.bf16.msra.mxu0 0
    %177 = vmatprep.subr.bf16.mxu0 0
    %178 = vmatpush2.bf16.msra.mxu0 0
    %179 = vmatprep.subr.bf16.mxu0 0
    %180 = vmatpush2.bf16.msra.mxu0 0
    %181 = vmatprep.mubr.bf16.mxu0 0
    %182 = vmatmul.mubr.bf16.gmra.mxu0 %v74
    %v183 = vpop.f32.mrf.mxu0
    %v184 = vadd.f32 %v100, %v183
    %v185 = vpop.f32.mrf.mxu0
    %v186 = vpop.f32.mrf.mxu0
    %v187 = vadd.f32 %v100, %v186
    %v188 = vpop.f32.mrf.mxu0
    %189 = vdwg.mxu0
    %190 = vadd.xlane.f32.xlu0 %v184
    %v191 = vpop.xlane.xlu0 %190
    %192 = vadd.xlane.f32.xlu0 %v187
    %v193 = vpop.xlane.xlu0 %192
    %v194 = vrcp.pop 128.0
    %v195 = vmul.f32 %v191, %v194
    %v196 = vmul.f32 %v193, %v194
    %v197 = vsub.f32 %v184, %v195
    %v198 = vsub.f32 %v187, %v196
    %v199 = vmul.f32 %v197, %v197
    %v200 = vmul.f32 %v198, %v198
    %201 = vadd.xlane.f32.xlu0 %v199
    %v202 = vpop.xlane.xlu0 %201
    %203 = vadd.xlane.f32.xlu0 %v200
    %v204 = vpop.xlane.xlu0 %203
    %v205 = vmul.f32 %v202, %v194
    %v206 = vmul.f32 %v204, %v194
    %v207 = vadd.f32 %v205, 1e-05
    %v208 = vadd.f32 %v206, 1e-05
    %v209 = vrsqrt.pop %v207
    %v210 = vrsqrt.pop %v208
    %v211 = vmul.f32 %v197, %v209
    %v212 = vmul.f32 %v198, %v210
    %v213 = vlaneseq
    %v214 = vshrl.u32 %v213, 7
    %v215 = vsub.s32 0, %v214
    %v216 = vrot.slane %v76, %v215
    %v217 = vmul.f32 %v211, %v216
    %v218 = vmul.f32 %v212, %v216
    %v219 = vlaneseq
    %v220 = vshrl.u32 %v219, 7
    %v221 = vsub.s32 0, %v220
    %v222 = vrot.slane %v77, %v221
    %v223 = vadd.f32 %v217, %v222
    %v224 = vadd.f32 %v218, %v222
    %v225 = vmax.f32 %v223, 0.0
    %v226 = vmax.f32 %v224, 0.0
    %v227 = vpack.c.bf16 %v226, %v225
    %v228 = vld [vmem:[#allocation7] sm:$0xf]
    %v229 = vld [vmem:[#allocation7 + $0x4] sm:$0xf]
    %v230 = vld [vmem:[#allocation7 + $0x8] sm:$0xf]
    %v231 = vld [vmem:[#allocation7 + $0xc] sm:$0xf]
    %v232 = vld [vmem:[#allocation7 + $0x10] sm:$0xf]
    %v233 = vld [vmem:[#allocation7 + $0x14] sm:$0xf]
    %v234 = vld [vmem:[#allocation7 + $0x18] sm:$0xf]
    %v235 = vld [vmem:[#allocation7 + $0x1c] sm:$0xf]
    %v236 = vld [vmem:[#allocation7 + $0x20] sm:$0xf]
    %v237 = vld [vmem:[#allocation7 + $0x24] sm:$0xf]
    %v238 = vld [vmem:[#allocation7 + $0x28] sm:$0xf]
    %v239 = vld [vmem:[#allocation7 + $0x2c] sm:$0xf]
    %v240 = vld [vmem:[#allocation7 + $0x30] sm:$0xf]
    %v241 = vld [vmem:[#allocation7 + $0x34] sm:$0xf]
    %v242 = vld [vmem:[#allocation7 + $0x38] sm:$0xf]
    %v243 = vld [vmem:[#allocation7 + $0x3c] sm:$0xf]
    %v244 = vlaneseq
    %v245 = vshrl.u32 %v244, 7
    %v246 = vsub.s32 0, %v245
    %v247 = vrot.slane %v78, %v246
    %v264 = vunpack.c.l.b16 %v228
    %v265 = vunpack.c.l.b16 %v229
    %v266 = vunpack.c.l.b16 %v230
    %v267 = vunpack.c.l.b16 %v231
    %v268 = vunpack.c.l.b16 %v232
    %v269 = vunpack.c.l.b16 %v233
    %v270 = vunpack.c.l.b16 %v234
    %v271 = vunpack.c.l.b16 %v235
    %v272 = vunpack.c.l.b16 %v236
    %v273 = vunpack.c.l.b16 %v237
    %v274 = vunpack.c.l.b16 %v238
    %v275 = vunpack.c.l.b16 %v239
    %v276 = vunpack.c.l.b16 %v240
    %v277 = vunpack.c.l.b16 %v241
    %v278 = vunpack.c.l.b16 %v242
    %v279 = vunpack.c.l.b16 %v243
    %v280 = vpack.c.b16 %v265, %v264
    %v281 = vpack.c.b16 %v267, %v266
    %v282 = vpack.c.b16 %v269, %v268
    %v283 = vpack.c.b16 %v271, %v270
    %v284 = vpack.c.b16 %v273, %v272
    %v285 = vpack.c.b16 %v275, %v274
    %v286 = vpack.c.b16 %v277, %v276
    %v287 = vpack.c.b16 %v279, %v278
    %296 = vmatprep.subr.bf16.mxu0 0
    %297 = vmatpush1.bf16.msra.mxu0 %v287
    %298 = vmatprep.subr.bf16.mxu0 0
    %299 = vmatpush1.bf16.msra.mxu0 %v286
    %300 = vmatprep.subr.bf16.mxu0 0
    %301 = vmatpush1.bf16.msra.mxu0 %v285
    %302 = vmatprep.subr.bf16.mxu0 0
    %303 = vmatpush1.bf16.msra.mxu0 %v284
    %304 = vmatprep.subr.bf16.mxu0 0
    %305 = vmatpush1.bf16.msra.mxu0 %v283
    %306 = vmatprep.subr.bf16.mxu0 0
    %307 = vmatpush1.bf16.msra.mxu0 %v282
    %308 = vmatprep.subr.bf16.mxu0 0
    %309 = vmatpush1.bf16.msra.mxu0 %v281
    %310 = vmatprep.subr.bf16.mxu0 0
    %311 = vmatpush1.bf16.msra.mxu0 %v280
    %312 = vmatprep.subr.bf16.mxu0 0
    %313 = vmatpush2.bf16.msra.mxu0 0
    %314 = vmatprep.subr.bf16.mxu0 0
    %315 = vmatpush2.bf16.msra.mxu0 0
    %316 = vmatprep.subr.bf16.mxu0 0
    %317 = vmatpush2.bf16.msra.mxu0 0
    %318 = vmatprep.subr.bf16.mxu0 0
    %319 = vmatpush2.bf16.msra.mxu0 0
    %320 = vmatprep.subr.bf16.mxu0 0
    %321 = vmatpush2.bf16.msra.mxu0 0
    %322 = vmatprep.subr.bf16.mxu0 0
    %323 = vmatpush2.bf16.msra.mxu0 0
    %324 = vmatprep.subr.bf16.mxu0 0
    %325 = vmatpush2.bf16.msra.mxu0 0
    %326 = vmatprep.subr.bf16.mxu0 0
    %327 = vmatpush2.bf16.msra.mxu0 0
    %328 = vmatprep.mubr.bf16.mxu0 0
    %329 = vmatmul.mubr.bf16.gmra.mxu0 %v227
    %v330 = vpop.f32.mrf.mxu0
    %v331 = vadd.f32 %v247, %v330
    %v332 = vpop.f32.mrf.mxu0
    %v333 = vpop.f32.mrf.mxu0
    %v334 = vadd.f32 %v247, %v333
    %v335 = vpop.f32.mrf.mxu0
    %336 = vdwg.mxu0
    %337 = vadd.xlane.f32.xlu0 %v331
    %v338 = vpop.xlane.xlu0 %337
    %339 = vadd.xlane.f32.xlu0 %v334
    %v340 = vpop.xlane.xlu0 %339
    %v341 = vmul.f32 %v338, %v194
    %v342 = vmul.f32 %v340, %v194
    %v343 = vsub.f32 %v331, %v341
    %v344 = vsub.f32 %v334, %v342
    %v345 = vmul.f32 %v343, %v343
    %v346 = vmul.f32 %v344, %v344
    %347 = vadd.xlane.f32.xlu0 %v345
    %v348 = vpop.xlane.xlu0 %347
    %349 = vadd.xlane.f32.xlu0 %v346
    %v350 = vpop.xlane.xlu0 %349
    %v351 = vmul.f32 %v348, %v194
    %v352 = vmul.f32 %v350, %v194
    %v353 = vadd.f32 %v351, 1e-05
    %v354 = vadd.f32 %v352, 1e-05
    %v355 = vrsqrt.pop %v353
    %v356 = vrsqrt.pop %v354
    %v357 = vmul.f32 %v343, %v355
    %v358 = vmul.f32 %v344, %v356
    %v359 = vlaneseq
    %v360 = vshrl.u32 %v359, 7
    %v361 = vsub.s32 0, %v360
    %v362 = vrot.slane %v79, %v361
    %v363 = vmul.f32 %v357, %v362
    %v364 = vmul.f32 %v358, %v362
    %v365 = vlaneseq
    %v366 = vshrl.u32 %v365, 7
    %v367 = vsub.s32 0, %v366
    %v368 = vrot.slane %v80, %v367
    %v369 = vadd.f32 %v363, %v368
    %v370 = vadd.f32 %v364, %v368
    %v371 = vadd.f32 %v72, %v369
    %v372 = vadd.f32 %v73, %v370
    %373 = vst [vmem:[#allocation10] sm:$0xff] %v371
    %374 = vst [vmem:[#allocation10 + $0x8] sm:$0xff] %v372
    // Predicated region
    $region34: #{tpu_custom_call.1} parent=1 // pred_check
      _
    $region35: #{tpu_custom_call.1} parent=1 // pred_check_branch
      %376 = sbr.rel (0) target = $region37
    $region36: #{tpu_custom_call.1} parent=1 // pred_region
      %s378 = ssub.s32 256, 256
      %379 = vsyncadd [#allocation4], %s378
      %s380 = sshll.u32 [#allocation10], 4
      %s381 = int_to_ptr.vmem [resolvable:$true] %s380
      %386 = dma.vmem_to_hbm [thread:$0]  %s381, 256, %s4, [#allocation4], 128, 128, 8
    $region37: #{tpu_custom_call.1} parent=1 // pred_fallthru
      _
    // Predicated region
    $region38: #{tpu_custom_call.1} parent=1 // pred_check
      _
    $region39: #{tpu_custom_call.1} parent=1 // pred_check_branch
      %388 = sbr.rel (0) target = $region41
    $region40: #{tpu_custom_call.1} parent=1 // pred_region
      %389 = dma.done [#allocation4], 256
    $region41: #{tpu_custom_call.1} parent=1 // pred_fallthru
      _
    %390 = vsyncpa [#allocation3], 1
    %391 = vsyncpa [#allocation6], 1
    %392 = vsyncpa [#allocation9], 1
    %393 = vsyncpa [#allocation4], 1

</llo_original>
